<compile_context>
chip_gen: v5e
topology: v5e:2x2
jax: 0.10.0
libtpu: 0.0.40
codegen_flags: <defaults>
</compile_context>

<pallas_src>
import functools
import math

import jax
import jax.numpy as jnp
from jax import lax
from jax.experimental import pallas as pl
from jax.experimental.pallas import tpu as pltpu


def _layernorm(v, gamma, beta, inv_d, eps=1e-5):
    # v: (L, D) f32, gamma/beta: (1, D) f32. Two-pass (v - mu)^2 form (no catastrophic
    # cancellation when |mean| >> std, matching the reference semantics).
    mu = jnp.sum(v, axis=-1, keepdims=True) * inv_d
    c = v - mu
    var = jnp.sum(c * c, axis=-1, keepdims=True) * inv_d
    return c * lax.rsqrt(var + eps) * gamma + beta


def transformer_block_kernel(
    x_ref,
    wqkv_ref, bqkv_ref, wo_ref, bo_ref,
    g1_ref, be1_ref,
    wf1_ref, bf1_ref, wf2_ref, bf2_ref,
    g2_ref, be2_ref,
    o_ref,
    attn_scratch,
    *, num_heads, head_dim,
):
    xb = x_ref[0]                                   # (L, D) f32
    L, D = xb.shape
    inv_d = 1.0 / D
    residual = xb
    xb_bf = xb.astype(jnp.bfloat16)

    # --- fused Q/K/V projection: one (L,D) x (D,3D) bf16 MXU pass, f32 accumulation ---
    qkv = jnp.dot(xb_bf, wqkv_ref[...],
                  preferred_element_type=jnp.float32) + bqkv_ref[...]   # (L, 3D) f32

    inv_sqrt_d = 1.0 / math.sqrt(head_dim)
    # Fold the score scale into q in f32 before the bf16 cast (single rounding).
    q_bf = (qkv[:, :D] * inv_sqrt_d).astype(jnp.bfloat16)
    k_bf = qkv[:, D:2 * D].astype(jnp.bfloat16)
    v_bf = qkv[:, 2 * D:].astype(jnp.bfloat16)

    # --- per-head attention; each head's output lands at its lane offsets in the
    # (L, D) VMEM scratch so W_o runs once at full contraction depth afterwards. ---
    for h in range(num_heads):                      # static loop (num_heads is tiny here)
        sl = slice(h * head_dim, (h + 1) * head_dim)
        qh = q_bf[:, sl]                            # (L, hd) bf16 (scale already folded in)
        kh = k_bf[:, sl]
        vh = v_bf[:, sl]

        # Transpose-free score matmul: contract the head dim of q and k.
        s = lax.dot_general(
            qh, kh, (((1,), (1,)), ((), ())),
            preferred_element_type=jnp.float32,
        )                                           # (L, L) f32

        s_max = jnp.max(s, axis=-1, keepdims=True)
        p = jnp.exp(s - s_max)                      # unnormalized softmax weights
        denom = jnp.sum(p, axis=-1, keepdims=True)  # (L, 1)

        pv = jnp.dot(p.astype(jnp.bfloat16), vh,
                     preferred_element_type=jnp.float32)        # (L, hd) f32
        # Deferred normalization on the narrow (L, hd) result; reciprocal on the EUP.
        attn_scratch[:, sl] = pv * pl.reciprocal(denom, approx=True)

    # Single fused output projection (full K depth, one MXU drain).
    attn_out = jnp.dot(attn_scratch[...].astype(jnp.bfloat16), wo_ref[...],
                       preferred_element_type=jnp.float32) + bo_ref[...]
    # dropout after attention / fc layers omitted (eval-mode identity).

    x1 = _layernorm(attn_out + residual, g1_ref[...], be1_ref[...], inv_d)

    # --- feedforward (bf16 MXU, f32 accumulation) ---
    h1 = jnp.dot(x1.astype(jnp.bfloat16), wf1_ref[...],
                 preferred_element_type=jnp.float32) + bf1_ref[...]
    h1 = jnp.maximum(h1, 0.0)                       # ReLU
    ff = jnp.dot(h1.astype(jnp.bfloat16), wf2_ref[...],
                 preferred_element_type=jnp.float32) + bf2_ref[...]

    out = _layernorm(ff + x1, g2_ref[...], be2_ref[...], inv_d)
    o_ref[0] = out.astype(o_ref.dtype)


def prepare_weights(params):
    """One-time (init-time) packing: fuse QKV and cast matmul weights to bf16."""
    bf16 = jnp.bfloat16
    wqkv = jnp.concatenate(
        [params["wq"], params["wk"], params["wv"]], axis=1).astype(bf16)   # (D, 3D)
    bqkv = jnp.concatenate([params["bq"], params["bk"], params["bv"]], axis=1)  # (1, 3D)
    return (
        wqkv, bqkv,
        params["wo"].astype(bf16), params["bo"],
        params["g1"], params["be1"],
        params["wf1"].astype(bf16), params["bf1"],
        params["wf2"].astype(bf16), params["bf2"],
        params["g2"], params["be2"],
    )


def transformer_block(x, weights, *, num_heads):
    B, L, D = x.shape
    head_dim = D // num_heads
    hidden_dim = weights[6].shape[1]                # wf1: (D, H)

    def full_spec(arr):
        nd = arr.ndim
        return pl.BlockSpec(arr.shape, lambda b, _nd=nd: (0,) * _nd)

    kernel = functools.partial(
        transformer_block_kernel, num_heads=num_heads, head_dim=head_dim
    )

    # Advisory cost hint so XLA schedules around the custom call sensibly.
    weight_bytes = sum(int(w.size) * w.dtype.itemsize for w in weights)
    flops = 2 * B * L * (3 * D * D            # fused QKV
                         + L * D              # scores (all heads)
                         + L * D              # P @ V (all heads)
                         + D * D              # output projection
                         + 2 * D * hidden_dim)  # FFN
    transcendentals = B * (num_heads * L * L      # exp
                           + num_heads * L        # softmax reciprocals
                           + 2 * L)               # layernorm rsqrt
    bytes_accessed = 2 * B * L * D * x.dtype.itemsize + weight_bytes
    cost = pl.CostEstimate(flops=flops, transcendentals=transcendentals,
                           bytes_accessed=bytes_accessed)

    return pl.pallas_call(
        kernel,
        out_shape=jax.ShapeDtypeStruct((B, L, D), x.dtype),
        grid_spec=pltpu.PrefetchScalarGridSpec(
            num_scalar_prefetch=0,
            grid=(B,),
            in_specs=[pl.BlockSpec((1, L, D), lambda b: (b, 0, 0))]
            + [full_spec(w) for w in weights],
            out_specs=pl.BlockSpec((1, L, D), lambda b: (b, 0, 0)),
            scratch_shapes=[pltpu.VMEM((L, D), jnp.float32)],
        ),
        # Batch elements are independent -> parallel (sharded across v7x's 2 TCs).
        # vmem_limit is tiny here; re-derive per chip at production shapes (v7x: 64 MiB).
        compiler_params=pltpu.CompilerParams(
            dimension_semantics=("parallel",),
            vmem_limit_bytes=32 * 1024 * 1024,
        ),
        cost_estimate=cost,
    )(x, *weights)


def make_params(key, input_dim, hidden_dim):
    ks = jax.random.split(key, 8)
    scale = 0.05

    def lin(k, din, dout):
        kw, kb = jax.random.split(k)
        w = scale * jax.random.normal(kw, (din, dout), jnp.float32)   # stored (in, out)
        b = scale * jax.random.normal(kb, (1, dout), jnp.float32)
        return w, b

    wq, bq = lin(ks[0], input_dim, input_dim)
    wk, bk = lin(ks[1], input_dim, input_dim)
    wv, bv = lin(ks[2], input_dim, input_dim)
    wo, bo = lin(ks[3], input_dim, input_dim)
    wf1, bf1 = lin(ks[4], input_dim, hidden_dim)
    wf2, bf2 = lin(ks[5], hidden_dim, input_dim)
    g1 = jnp.ones((1, input_dim), jnp.float32)
    be1 = jnp.zeros((1, input_dim), jnp.float32)
    g2 = jnp.ones((1, input_dim), jnp.float32)
    be2 = jnp.zeros((1, input_dim), jnp.float32)
    return dict(wq=wq, bq=bq, wk=wk, bk=bk, wv=wv, bv=bv, wo=wo, bo=bo,
                g1=g1, be1=be1, wf1=wf1, bf1=bf1, wf2=wf2, bf2=bf2,
                g2=g2, be2=be2)


def reference_forward(x, p, num_heads):
    # Pure-JAX f32 reference of the PyTorch module (dropout = identity).
    B, L, D = x.shape
    hd = D // num_heads
    residual = x
    q = x @ p["wq"] + p["bq"][0]
    k = x @ p["wk"] + p["bk"][0]
    v = x @ p["wv"] + p["bv"][0]
    q = q.reshape(B, L, num_heads, hd)
    k = k.reshape(B, L, num_heads, hd)
    v = v.reshape(B, L, num_heads, hd)
    scores = jnp.einsum("bqhd,bkhd->bhqk", q, k) / math.sqrt(hd)
    w = jax.nn.softmax(scores, axis=-1)
    att = jnp.einsum("bhqk,bkhd->bqhd", w, v).reshape(B, L, D)
    att = att @ p["wo"] + p["bo"][0]

    def ln(v, g, b):
        mu = jnp.mean(v, axis=-1, keepdims=True)
        var = jnp.mean((v - mu) ** 2, axis=-1, keepdims=True)
        return (v - mu) / jnp.sqrt(var + 1e-5) * g[0] + b[0]

    x1 = ln(att + residual, p["g1"], p["be1"])
    h1 = jnp.maximum(x1 @ p["wf1"] + p["bf1"][0], 0.0)
    ff = h1 @ p["wf2"] + p["bf2"][0]
    return ln(ff + x1, p["g2"], p["be2"])


if __name__ == "__main__":
    B, L, D = 2, 8, 32
    num_heads = 4
    hidden_dim = 64

    key = jax.random.PRNGKey(0)
    kx, kp = jax.random.split(key)
    x = jax.random.normal(kx, (B, L, D), jnp.float32)
    params = make_params(kp, D, hidden_dim)
    weights = prepare_weights(params)               # one-time bf16 cast + QKV fusion

    out = transformer_block(x, weights, num_heads=num_heads)
    out = jax.block_until_ready(out)

    ref = reference_forward(x, params, num_heads)
    assert out.shape == (B, L, D)
    # bf16 matmuls (f32 accumulation) + approx reciprocal vs. an all-f32 reference.
    assert jnp.allclose(out, ref, atol=3e-2, rtol=3e-2), "mismatch vs pure-JAX reference"
    assert bool(jnp.all(jnp.isfinite(out)))
    print("KERNEL_OK")
</pallas_src>

<mosaic_0001>
module attributes {stable_mosaic.version = 11 : i64} {
  func.func @transformer_block_kernel(%arg0: i32, %arg1: memref<1x8x32xf32, #tpu.memory_space<vmem>>, %arg2: memref<32x96xbf16, #tpu.memory_space<vmem>>, %arg3: memref<1x96xf32, #tpu.memory_space<vmem>>, %arg4: memref<32x32xbf16, #tpu.memory_space<vmem>>, %arg5: memref<1x32xf32, #tpu.memory_space<vmem>>, %arg6: memref<1x32xf32, #tpu.memory_space<vmem>>, %arg7: memref<1x32xf32, #tpu.memory_space<vmem>>, %arg8: memref<32x64xbf16, #tpu.memory_space<vmem>>, %arg9: memref<1x64xf32, #tpu.memory_space<vmem>>, %arg10: memref<64x32xbf16, #tpu.memory_space<vmem>>, %arg11: memref<1x32xf32, #tpu.memory_space<vmem>>, %arg12: memref<1x32xf32, #tpu.memory_space<vmem>>, %arg13: memref<1x32xf32, #tpu.memory_space<vmem>>, %arg14: memref<1x8x32xf32, #tpu.memory_space<vmem>>, %arg15: memref<8x32xf32, #tpu.memory_space<vmem>>) attributes {dimension_semantics = [#tpu.dimension_semantics<parallel>], iteration_bounds = array<i64: 2>, scalar_prefetch = 0 : i64, scratch_operands = 1 : i64, tpu.core_type = #tpu.core_type<tc>, window_params = [{transform_indices = @transform_0, window_bounds = array<i64: 1, 8, 32>}, {pipeline_mode = #tpu.pipeline_mode<synchronous>, transform_indices = @transform_1, window_bounds = array<i64: 32, 96>}, {pipeline_mode = #tpu.pipeline_mode<synchronous>, transform_indices = @transform_2, window_bounds = array<i64: 1, 96>}, {pipeline_mode = #tpu.pipeline_mode<synchronous>, transform_indices = @transform_3, window_bounds = array<i64: 32, 32>}, {pipeline_mode = #tpu.pipeline_mode<synchronous>, transform_indices = @transform_4, window_bounds = array<i64: 1, 32>}, {pipeline_mode = #tpu.pipeline_mode<synchronous>, transform_indices = @transform_5, window_bounds = array<i64: 1, 32>}, {pipeline_mode = #tpu.pipeline_mode<synchronous>, transform_indices = @transform_6, window_bounds = array<i64: 1, 32>}, {pipeline_mode = #tpu.pipeline_mode<synchronous>, transform_indices = @transform_7, window_bounds = array<i64: 32, 64>}, {pipeline_mode = #tpu.pipeline_mode<synchronous>, transform_indices = @transform_8, window_bounds = array<i64: 1, 64>}, {pipeline_mode = #tpu.pipeline_mode<synchronous>, transform_indices = @transform_9, window_bounds = array<i64: 64, 32>}, {pipeline_mode = #tpu.pipeline_mode<synchronous>, transform_indices = @transform_10, window_bounds = array<i64: 1, 32>}, {pipeline_mode = #tpu.pipeline_mode<synchronous>, transform_indices = @transform_11, window_bounds = array<i64: 1, 32>}, {pipeline_mode = #tpu.pipeline_mode<synchronous>, transform_indices = @transform_12, window_bounds = array<i64: 1, 32>}, {transform_indices = @transform_13, window_bounds = array<i64: 1, 8, 32>}]} {
    %c0 = arith.constant 0 : index
    %c0_0 = arith.constant 0 : index
    %c0_1 = arith.constant 0 : index
    %0 = vector.load %arg1[%c0, %c0_0, %c0_1] : memref<1x8x32xf32, #tpu.memory_space<vmem>>, vector<1x8x32xf32>
    %1 = vector.shape_cast %0 : vector<1x8x32xf32> to vector<8x32xf32>
    %2 = arith.truncf %1 : vector<8x32xf32> to vector<8x32xbf16>
    %c0_2 = arith.constant 0 : index
    %c0_3 = arith.constant 0 : index
    %3 = vector.load %arg2[%c0_2, %c0_3] : memref<32x96xbf16, #tpu.memory_space<vmem>>, vector<32x96xbf16>
    %cst = arith.constant dense<0.000000e+00> : vector<8x96xf32>
    %4 = tpu.matmul %2, %3, %cst {dimension_numbers = #tpu.dot_dimension_numbers<[1], [0], [0], [1], [0, 0, 1, 1], [], []>} : vector<8x32xbf16>, vector<32x96xbf16>, vector<8x96xf32> -> vector<8x96xf32>
    %c0_4 = arith.constant 0 : index
    %c0_5 = arith.constant 0 : index
    %5 = vector.load %arg3[%c0_4, %c0_5] : memref<1x96xf32, #tpu.memory_space<vmem>>, vector<1x96xf32>
    %6 = vector.broadcast %5 : vector<1x96xf32> to vector<8x96xf32>
    %7 = arith.addf %4, %6 : vector<8x96xf32>
    %8 = vector.extract_strided_slice %7 {offsets = [0, 0], sizes = [8, 32], strides = [1, 1]} : vector<8x96xf32> to vector<8x32xf32>
    %cst_6 = arith.constant 0.353553385 : f32
    %9 = vector.broadcast %cst_6 : f32 to vector<8x32xf32>
    %10 = arith.mulf %8, %9 : vector<8x32xf32>
    %11 = arith.truncf %10 : vector<8x32xf32> to vector<8x32xbf16>
    %12 = vector.extract_strided_slice %7 {offsets = [0, 32], sizes = [8, 32], strides = [1, 1]} : vector<8x96xf32> to vector<8x32xf32>
    %13 = arith.truncf %12 : vector<8x32xf32> to vector<8x32xbf16>
    %14 = vector.extract_strided_slice %7 {offsets = [0, 64], sizes = [8, 32], strides = [1, 1]} : vector<8x96xf32> to vector<8x32xf32>
    %15 = arith.truncf %14 : vector<8x32xf32> to vector<8x32xbf16>
    %16 = vector.extract_strided_slice %11 {offsets = [0, 0], sizes = [8, 8], strides = [1, 1]} : vector<8x32xbf16> to vector<8x8xbf16>
    %17 = vector.extract_strided_slice %13 {offsets = [0, 0], sizes = [8, 8], strides = [1, 1]} : vector<8x32xbf16> to vector<8x8xbf16>
    %18 = vector.extract_strided_slice %15 {offsets = [0, 0], sizes = [8, 8], strides = [1, 1]} : vector<8x32xbf16> to vector<8x8xbf16>
    %cst_7 = arith.constant dense<0.000000e+00> : vector<8x8xf32>
    %19 = tpu.matmul %16, %17, %cst_7 {dimension_numbers = #tpu.dot_dimension_numbers<[1], [1], [0], [0], [0, 0, 1, 0], [], []>} : vector<8x8xbf16>, vector<8x8xbf16>, vector<8x8xf32> -> vector<8x8xf32>
    %cst_8 = arith.constant dense<0xFF800000> : vector<8xf32>
    %20 = vector.multi_reduction <maximumf>, %19, %cst_8 [1] : vector<8x8xf32> to vector<8xf32>
    %21 = vector.shape_cast %20 : vector<8xf32> to vector<8x1xf32>
    %22 = vector.broadcast %21 : vector<8x1xf32> to vector<8x8xf32>
    %23 = arith.subf %19, %22 : vector<8x8xf32>
    %24 = math.exp %23 : vector<8x8xf32>
    %cst_9 = arith.constant dense<0.000000e+00> : vector<8xf32>
    %25 = vector.multi_reduction <add>, %24, %cst_9 [1] : vector<8x8xf32> to vector<8xf32>
    %26 = vector.shape_cast %25 : vector<8xf32> to vector<8x1xf32>
    %27 = arith.truncf %24 : vector<8x8xf32> to vector<8x8xbf16>
    %cst_10 = arith.constant dense<0.000000e+00> : vector<8x8xf32>
    %28 = tpu.matmul %27, %18, %cst_10 {dimension_numbers = #tpu.dot_dimension_numbers<[1], [0], [0], [1], [0, 0, 1, 1], [], []>} : vector<8x8xbf16>, vector<8x8xbf16>, vector<8x8xf32> -> vector<8x8xf32>
    %29 = tpu.reciprocal %26 {approx = true} : vector<8x1xf32> -> vector<8x1xf32>
    %30 = vector.broadcast %29 : vector<8x1xf32> to vector<8x8xf32>
    %31 = arith.mulf %28, %30 : vector<8x8xf32>
    %c0_11 = arith.constant 0 : index
    %c0_12 = arith.constant 0 : index
    %32 = vector.load %arg15[%c0_11, %c0_12] : memref<8x32xf32, #tpu.memory_space<vmem>>, vector<8x8xf32>
    tpu.vector_store %arg15[%c0_11, %c0_12], %31 {strides = array<i32>} : memref<8x32xf32, #tpu.memory_space<vmem>>, vector<8x8xf32>,
    %33 = vector.extract_strided_slice %11 {offsets = [0, 8], sizes = [8, 8], strides = [1, 1]} : vector<8x32xbf16> to vector<8x8xbf16>
    %34 = vector.extract_strided_slice %13 {offsets = [0, 8], sizes = [8, 8], strides = [1, 1]} : vector<8x32xbf16> to vector<8x8xbf16>
    %35 = vector.extract_strided_slice %15 {offsets = [0, 8], sizes = [8, 8], strides = [1, 1]} : vector<8x32xbf16> to vector<8x8xbf16>
    %cst_13 = arith.constant dense<0.000000e+00> : vector<8x8xf32>
    %36 = tpu.matmul %33, %34, %cst_13 {dimension_numbers = #tpu.dot_dimension_numbers<[1], [1], [0], [0], [0, 0, 1, 0], [], []>} : vector<8x8xbf16>, vector<8x8xbf16>, vector<8x8xf32> -> vector<8x8xf32>
    %cst_14 = arith.constant dense<0xFF800000> : vector<8xf32>
    %37 = vector.multi_reduction <maximumf>, %36, %cst_14 [1] : vector<8x8xf32> to vector<8xf32>
    %38 = vector.shape_cast %37 : vector<8xf32> to vector<8x1xf32>
    %39 = vector.broadcast %38 : vector<8x1xf32> to vector<8x8xf32>
    %40 = arith.subf %36, %39 : vector<8x8xf32>
    %41 = math.exp %40 : vector<8x8xf32>
    %cst_15 = arith.constant dense<0.000000e+00> : vector<8xf32>
    %42 = vector.multi_reduction <add>, %41, %cst_15 [1] : vector<8x8xf32> to vector<8xf32>
    %43 = vector.shape_cast %42 : vector<8xf32> to vector<8x1xf32>
    %44 = arith.truncf %41 : vector<8x8xf32> to vector<8x8xbf16>
    %cst_16 = arith.constant dense<0.000000e+00> : vector<8x8xf32>
    %45 = tpu.matmul %44, %35, %cst_16 {dimension_numbers = #tpu.dot_dimension_numbers<[1], [0], [0], [1], [0, 0, 1, 1], [], []>} : vector<8x8xbf16>, vector<8x8xbf16>, vector<8x8xf32> -> vector<8x8xf32>
    %46 = tpu.reciprocal %43 {approx = true} : vector<8x1xf32> -> vector<8x1xf32>
    %47 = vector.broadcast %46 : vector<8x1xf32> to vector<8x8xf32>
    %48 = arith.mulf %45, %47 : vector<8x8xf32>
    %c0_17 = arith.constant 0 : index
    %c8 = arith.constant 8 : index
    %49 = vector.load %arg15[%c0_17, %c8] : memref<8x32xf32, #tpu.memory_space<vmem>>, vector<8x8xf32>
    tpu.vector_store %arg15[%c0_17, %c8], %48 {strides = array<i32>} : memref<8x32xf32, #tpu.memory_space<vmem>>, vector<8x8xf32>,
    %50 = vector.extract_strided_slice %11 {offsets = [0, 16], sizes = [8, 8], strides = [1, 1]} : vector<8x32xbf16> to vector<8x8xbf16>
    %51 = vector.extract_strided_slice %13 {offsets = [0, 16], sizes = [8, 8], strides = [1, 1]} : vector<8x32xbf16> to vector<8x8xbf16>
    %52 = vector.extract_strided_slice %15 {offsets = [0, 16], sizes = [8, 8], strides = [1, 1]} : vector<8x32xbf16> to vector<8x8xbf16>
    %cst_18 = arith.constant dense<0.000000e+00> : vector<8x8xf32>
    %53 = tpu.matmul %50, %51, %cst_18 {dimension_numbers = #tpu.dot_dimension_numbers<[1], [1], [0], [0], [0, 0, 1, 0], [], []>} : vector<8x8xbf16>, vector<8x8xbf16>, vector<8x8xf32> -> vector<8x8xf32>
    %cst_19 = arith.constant dense<0xFF800000> : vector<8xf32>
    %54 = vector.multi_reduction <maximumf>, %53, %cst_19 [1] : vector<8x8xf32> to vector<8xf32>
    %55 = vector.shape_cast %54 : vector<8xf32> to vector<8x1xf32>
    %56 = vector.broadcast %55 : vector<8x1xf32> to vector<8x8xf32>
    %57 = arith.subf %53, %56 : vector<8x8xf32>
    %58 = math.exp %57 : vector<8x8xf32>
    %cst_20 = arith.constant dense<0.000000e+00> : vector<8xf32>
    %59 = vector.multi_reduction <add>, %58, %cst_20 [1] : vector<8x8xf32> to vector<8xf32>
    %60 = vector.shape_cast %59 : vector<8xf32> to vector<8x1xf32>
    %61 = arith.truncf %58 : vector<8x8xf32> to vector<8x8xbf16>
    %cst_21 = arith.constant dense<0.000000e+00> : vector<8x8xf32>
    %62 = tpu.matmul %61, %52, %cst_21 {dimension_numbers = #tpu.dot_dimension_numbers<[1], [0], [0], [1], [0, 0, 1, 1], [], []>} : vector<8x8xbf16>, vector<8x8xbf16>, vector<8x8xf32> -> vector<8x8xf32>
    %63 = tpu.reciprocal %60 {approx = true} : vector<8x1xf32> -> vector<8x1xf32>
    %64 = vector.broadcast %63 : vector<8x1xf32> to vector<8x8xf32>
    %65 = arith.mulf %62, %64 : vector<8x8xf32>
    %c0_22 = arith.constant 0 : index
    %c16 = arith.constant 16 : index
    %66 = vector.load %arg15[%c0_22, %c16] : memref<8x32xf32, #tpu.memory_space<vmem>>, vector<8x8xf32>
    tpu.vector_store %arg15[%c0_22, %c16], %65 {strides = array<i32>} : memref<8x32xf32, #tpu.memory_space<vmem>>, vector<8x8xf32>,
    %67 = vector.extract_strided_slice %11 {offsets = [0, 24], sizes = [8, 8], strides = [1, 1]} : vector<8x32xbf16> to vector<8x8xbf16>
    %68 = vector.extract_strided_slice %13 {offsets = [0, 24], sizes = [8, 8], strides = [1, 1]} : vector<8x32xbf16> to vector<8x8xbf16>
    %69 = vector.extract_strided_slice %15 {offsets = [0, 24], sizes = [8, 8], strides = [1, 1]} : vector<8x32xbf16> to vector<8x8xbf16>
    %cst_23 = arith.constant dense<0.000000e+00> : vector<8x8xf32>
    %70 = tpu.matmul %67, %68, %cst_23 {dimension_numbers = #tpu.dot_dimension_numbers<[1], [1], [0], [0], [0, 0, 1, 0], [], []>} : vector<8x8xbf16>, vector<8x8xbf16>, vector<8x8xf32> -> vector<8x8xf32>
    %cst_24 = arith.constant dense<0xFF800000> : vector<8xf32>
    %71 = vector.multi_reduction <maximumf>, %70, %cst_24 [1] : vector<8x8xf32> to vector<8xf32>
    %72 = vector.shape_cast %71 : vector<8xf32> to vector<8x1xf32>
    %73 = vector.broadcast %72 : vector<8x1xf32> to vector<8x8xf32>
    %74 = arith.subf %70, %73 : vector<8x8xf32>
    %75 = math.exp %74 : vector<8x8xf32>
    %cst_25 = arith.constant dense<0.000000e+00> : vector<8xf32>
    %76 = vector.multi_reduction <add>, %75, %cst_25 [1] : vector<8x8xf32> to vector<8xf32>
    %77 = vector.shape_cast %76 : vector<8xf32> to vector<8x1xf32>
    %78 = arith.truncf %75 : vector<8x8xf32> to vector<8x8xbf16>
    %cst_26 = arith.constant dense<0.000000e+00> : vector<8x8xf32>
    %79 = tpu.matmul %78, %69, %cst_26 {dimension_numbers = #tpu.dot_dimension_numbers<[1], [0], [0], [1], [0, 0, 1, 1], [], []>} : vector<8x8xbf16>, vector<8x8xbf16>, vector<8x8xf32> -> vector<8x8xf32>
    %80 = tpu.reciprocal %77 {approx = true} : vector<8x1xf32> -> vector<8x1xf32>
    %81 = vector.broadcast %80 : vector<8x1xf32> to vector<8x8xf32>
    %82 = arith.mulf %79, %81 : vector<8x8xf32>
    %c0_27 = arith.constant 0 : index
    %c24 = arith.constant 24 : index
    %83 = vector.load %arg15[%c0_27, %c24] : memref<8x32xf32, #tpu.memory_space<vmem>>, vector<8x8xf32>
    tpu.vector_store %arg15[%c0_27, %c24], %82 {strides = array<i32>} : memref<8x32xf32, #tpu.memory_space<vmem>>, vector<8x8xf32>,
    %c0_28 = arith.constant 0 : index
    %c0_29 = arith.constant 0 : index
    %84 = vector.load %arg15[%c0_28, %c0_29] : memref<8x32xf32, #tpu.memory_space<vmem>>, vector<8x32xf32>
    %85 = arith.truncf %84 : vector<8x32xf32> to vector<8x32xbf16>
    %c0_30 = arith.constant 0 : index
    %c0_31 = arith.constant 0 : index
    %86 = vector.load %arg4[%c0_30, %c0_31] : memref<32x32xbf16, #tpu.memory_space<vmem>>, vector<32x32xbf16>
    %cst_32 = arith.constant dense<0.000000e+00> : vector<8x32xf32>
    %87 = tpu.matmul %85, %86, %cst_32 {dimension_numbers = #tpu.dot_dimension_numbers<[1], [0], [0], [1], [0, 0, 1, 1], [], []>} : vector<8x32xbf16>, vector<32x32xbf16>, vector<8x32xf32> -> vector<8x32xf32>
    %c0_33 = arith.constant 0 : index
    %c0_34 = arith.constant 0 : index
    %88 = vector.load %arg5[%c0_33, %c0_34] : memref<1x32xf32, #tpu.memory_space<vmem>>, vector<1x32xf32>
    %89 = vector.broadcast %88 : vector<1x32xf32> to vector<8x32xf32>
    %90 = arith.addf %87, %89 : vector<8x32xf32>
    %91 = arith.addf %90, %1 : vector<8x32xf32>
    %c0_35 = arith.constant 0 : index
    %c0_36 = arith.constant 0 : index
    %92 = vector.load %arg6[%c0_35, %c0_36] : memref<1x32xf32, #tpu.memory_space<vmem>>, vector<1x32xf32>
    %c0_37 = arith.constant 0 : index
    %c0_38 = arith.constant 0 : index
    %93 = vector.load %arg7[%c0_37, %c0_38] : memref<1x32xf32, #tpu.memory_space<vmem>>, vector<1x32xf32>
    %cst_39 = arith.constant dense<0.000000e+00> : vector<8xf32>
    %94 = vector.multi_reduction <add>, %91, %cst_39 [1] : vector<8x32xf32> to vector<8xf32>
    %95 = vector.shape_cast %94 : vector<8xf32> to vector<8x1xf32>
    %cst_40 = arith.constant 3.125000e-02 : f32
    %96 = vector.broadcast %cst_40 : f32 to vector<8x1xf32>
    %97 = arith.mulf %95, %96 : vector<8x1xf32>
    %98 = vector.broadcast %97 : vector<8x1xf32> to vector<8x32xf32>
    %99 = arith.subf %91, %98 : vector<8x32xf32>
    %100 = arith.mulf %99, %99 : vector<8x32xf32>
    %cst_41 = arith.constant dense<0.000000e+00> : vector<8xf32>
    %101 = vector.multi_reduction <add>, %100, %cst_41 [1] : vector<8x32xf32> to vector<8xf32>
    %102 = vector.shape_cast %101 : vector<8xf32> to vector<8x1xf32>
    %cst_42 = arith.constant 3.125000e-02 : f32
    %103 = vector.broadcast %cst_42 : f32 to vector<8x1xf32>
    %104 = arith.mulf %102, %103 : vector<8x1xf32>
    %cst_43 = arith.constant 9.99999974E-6 : f32
    %105 = vector.broadcast %cst_43 : f32 to vector<8x1xf32>
    %106 = arith.addf %104, %105 : vector<8x1xf32>
    %107 = math.rsqrt %106 : vector<8x1xf32>
    %108 = vector.broadcast %107 : vector<8x1xf32> to vector<8x32xf32>
    %109 = arith.mulf %99, %108 : vector<8x32xf32>
    %110 = vector.broadcast %92 : vector<1x32xf32> to vector<8x32xf32>
    %111 = arith.mulf %109, %110 : vector<8x32xf32>
    %112 = vector.broadcast %93 : vector<1x32xf32> to vector<8x32xf32>
    %113 = arith.addf %111, %112 : vector<8x32xf32>
    %114 = arith.truncf %113 : vector<8x32xf32> to vector<8x32xbf16>
    %c0_44 = arith.constant 0 : index
    %c0_45 = arith.constant 0 : index
    %115 = vector.load %arg8[%c0_44, %c0_45] : memref<32x64xbf16, #tpu.memory_space<vmem>>, vector<32x64xbf16>
    %cst_46 = arith.constant dense<0.000000e+00> : vector<8x64xf32>
    %116 = tpu.matmul %114, %115, %cst_46 {dimension_numbers = #tpu.dot_dimension_numbers<[1], [0], [0], [1], [0, 0, 1, 1], [], []>} : vector<8x32xbf16>, vector<32x64xbf16>, vector<8x64xf32> -> vector<8x64xf32>
    %c0_47 = arith.constant 0 : index
    %c0_48 = arith.constant 0 : index
    %117 = vector.load %arg9[%c0_47, %c0_48] : memref<1x64xf32, #tpu.memory_space<vmem>>, vector<1x64xf32>
    %118 = vector.broadcast %117 : vector<1x64xf32> to vector<8x64xf32>
    %119 = arith.addf %116, %118 : vector<8x64xf32>
    %cst_49 = arith.constant 0.000000e+00 : f32
    %120 = vector.broadcast %cst_49 : f32 to vector<8x64xf32>
    %121 = arith.maximumf %119, %120 : vector<8x64xf32>
    %122 = arith.truncf %121 : vector<8x64xf32> to vector<8x64xbf16>
    %c0_50 = arith.constant 0 : index
    %c0_51 = arith.constant 0 : index
    %123 = vector.load %arg10[%c0_50, %c0_51] : memref<64x32xbf16, #tpu.memory_space<vmem>>, vector<64x32xbf16>
    %cst_52 = arith.constant dense<0.000000e+00> : vector<8x32xf32>
    %124 = tpu.matmul %122, %123, %cst_52 {dimension_numbers = #tpu.dot_dimension_numbers<[1], [0], [0], [1], [0, 0, 1, 1], [], []>} : vector<8x64xbf16>, vector<64x32xbf16>, vector<8x32xf32> -> vector<8x32xf32>
    %c0_53 = arith.constant 0 : index
    %c0_54 = arith.constant 0 : index
    %125 = vector.load %arg11[%c0_53, %c0_54] : memref<1x32xf32, #tpu.memory_space<vmem>>, vector<1x32xf32>
    %126 = vector.broadcast %125 : vector<1x32xf32> to vector<8x32xf32>
    %127 = arith.addf %124, %126 : vector<8x32xf32>
    %128 = arith.addf %127, %113 : vector<8x32xf32>
    %c0_55 = arith.constant 0 : index
    %c0_56 = arith.constant 0 : index
    %129 = vector.load %arg12[%c0_55, %c0_56] : memref<1x32xf32, #tpu.memory_space<vmem>>, vector<1x32xf32>
    %c0_57 = arith.constant 0 : index
    %c0_58 = arith.constant 0 : index
    %130 = vector.load %arg13[%c0_57, %c0_58] : memref<1x32xf32, #tpu.memory_space<vmem>>, vector<1x32xf32>
    %cst_59 = arith.constant dense<0.000000e+00> : vector<8xf32>
    %131 = vector.multi_reduction <add>, %128, %cst_59 [1] : vector<8x32xf32> to vector<8xf32>
    %132 = vector.shape_cast %131 : vector<8xf32> to vector<8x1xf32>
    %cst_60 = arith.constant 3.125000e-02 : f32
    %133 = vector.broadcast %cst_60 : f32 to vector<8x1xf32>
    %134 = arith.mulf %132, %133 : vector<8x1xf32>
    %135 = vector.broadcast %134 : vector<8x1xf32> to vector<8x32xf32>
    %136 = arith.subf %128, %135 : vector<8x32xf32>
    %137 = arith.mulf %136, %136 : vector<8x32xf32>
    %cst_61 = arith.constant dense<0.000000e+00> : vector<8xf32>
    %138 = vector.multi_reduction <add>, %137, %cst_61 [1] : vector<8x32xf32> to vector<8xf32>
    %139 = vector.shape_cast %138 : vector<8xf32> to vector<8x1xf32>
    %cst_62 = arith.constant 3.125000e-02 : f32
    %140 = vector.broadcast %cst_62 : f32 to vector<8x1xf32>
    %141 = arith.mulf %139, %140 : vector<8x1xf32>
    %cst_63 = arith.constant 9.99999974E-6 : f32
    %142 = vector.broadcast %cst_63 : f32 to vector<8x1xf32>
    %143 = arith.addf %141, %142 : vector<8x1xf32>
    %144 = math.rsqrt %143 : vector<8x1xf32>
    %145 = vector.broadcast %144 : vector<8x1xf32> to vector<8x32xf32>
    %146 = arith.mulf %136, %145 : vector<8x32xf32>
    %147 = vector.broadcast %129 : vector<1x32xf32> to vector<8x32xf32>
    %148 = arith.mulf %146, %147 : vector<8x32xf32>
    %149 = vector.broadcast %130 : vector<1x32xf32> to vector<8x32xf32>
    %150 = arith.addf %148, %149 : vector<8x32xf32>
    %c0_64 = arith.constant 0 : index
    %c0_65 = arith.constant 0 : index
    %c0_66 = arith.constant 0 : index
    %151 = vector.load %arg14[%c0_64, %c0_65, %c0_66] : memref<1x8x32xf32, #tpu.memory_space<vmem>>, vector<1x8x32xf32>
    %152 = vector.shape_cast %151 : vector<1x8x32xf32> to vector<8x32xf32>
    %153 = vector.shape_cast %150 : vector<8x32xf32> to vector<1x8x32xf32>
    tpu.vector_store %arg14[%c0_64, %c0_65, %c0_66], %153 {strides = array<i32>} : memref<1x8x32xf32, #tpu.memory_space<vmem>>, vector<1x8x32xf32>,
    return
  }
  func.func @transform_0(%arg0: i32) -> (i32, i32, i32) {
    %c0_i32 = arith.constant 0 : i32
    %c0_i32_0 = arith.constant 0 : i32
    %c0_i32_1 = arith.constant 0 : i32
    return %arg0, %c0_i32, %c0_i32_0 : i32, i32, i32
  }
  func.func @transform_1(%arg0: i32) -> (i32, i32) {
    %c0_i32 = arith.constant 0 : i32
    %c0_i32_0 = arith.constant 0 : i32
    %c0_i32_1 = arith.constant 0 : i32
    return %c0_i32, %c0_i32_0 : i32, i32
  }
  func.func @transform_2(%arg0: i32) -> (i32, i32) {
    %c0_i32 = arith.constant 0 : i32
    %c0_i32_0 = arith.constant 0 : i32
    %c0_i32_1 = arith.constant 0 : i32
    return %c0_i32, %c0_i32_0 : i32, i32
  }
  func.func @transform_3(%arg0: i32) -> (i32, i32) {
    %c0_i32 = arith.constant 0 : i32
    %c0_i32_0 = arith.constant 0 : i32
    %c0_i32_1 = arith.constant 0 : i32
    return %c0_i32, %c0_i32_0 : i32, i32
  }
  func.func @transform_4(%arg0: i32) -> (i32, i32) {
    %c0_i32 = arith.constant 0 : i32
    %c0_i32_0 = arith.constant 0 : i32
    %c0_i32_1 = arith.constant 0 : i32
    return %c0_i32, %c0_i32_0 : i32, i32
  }
  func.func @transform_5(%arg0: i32) -> (i32, i32) {
    %c0_i32 = arith.constant 0 : i32
    %c0_i32_0 = arith.constant 0 : i32
    %c0_i32_1 = arith.constant 0 : i32
    return %c0_i32, %c0_i32_0 : i32, i32
  }
  func.func @transform_6(%arg0: i32) -> (i32, i32) {
    %c0_i32 = arith.constant 0 : i32
    %c0_i32_0 = arith.constant 0 : i32
    %c0_i32_1 = arith.constant 0 : i32
    return %c0_i32, %c0_i32_0 : i32, i32
  }
  func.func @transform_7(%arg0: i32) -> (i32, i32) {
    %c0_i32 = arith.constant 0 : i32
    %c0_i32_0 = arith.constant 0 : i32
    %c0_i32_1 = arith.constant 0 : i32
    return %c0_i32, %c0_i32_0 : i32, i32
  }
  func.func @transform_8(%arg0: i32) -> (i32, i32) {
    %c0_i32 = arith.constant 0 : i32
    %c0_i32_0 = arith.constant 0 : i32
    %c0_i32_1 = arith.constant 0 : i32
    return %c0_i32, %c0_i32_0 : i32, i32
  }
  func.func @transform_9(%arg0: i32) -> (i32, i32) {
    %c0_i32 = arith.constant 0 : i32
    %c0_i32_0 = arith.constant 0 : i32
    %c0_i32_1 = arith.constant 0 : i32
    return %c0_i32, %c0_i32_0 : i32, i32
  }
  func.func @transform_10(%arg0: i32) -> (i32, i32) {
    %c0_i32 = arith.constant 0 : i32
    %c0_i32_0 = arith.constant 0 : i32
    %c0_i32_1 = arith.constant 0 : i32
    return %c0_i32, %c0_i32_0 : i32, i32
  }
  func.func @transform_11(%arg0: i32) -> (i32, i32) {
    %c0_i32 = arith.constant 0 : i32
    %c0_i32_0 = arith.constant 0 : i32
    %c0_i32_1 = arith.constant 0 : i32
    return %c0_i32, %c0_i32_0 : i32, i32
  }
  func.func @transform_12(%arg0: i32) -> (i32, i32) {
    %c0_i32 = arith.constant 0 : i32
    %c0_i32_0 = arith.constant 0 : i32
    %c0_i32_1 = arith.constant 0 : i32
    return %c0_i32, %c0_i32_0 : i32, i32
  }
  func.func @transform_13(%arg0: i32) -> (i32, i32, i32) {
    %c0_i32 = arith.constant 0 : i32
    %c0_i32_0 = arith.constant 0 : i32
    %c0_i32_1 = arith.constant 0 : i32
    return %arg0, %c0_i32, %c0_i32_0 : i32, i32, i32
  }
}

</mosaic_0001>

<llo_original>
// kernel: tpu_custom_call.1
$region0: #{tpu_custom_call.1}
  #allocation0 [shape = 'u32[]', space=smem, size = 0x4, offset = 0x4, fixed_abs, tag = 'smem constant byte address 0x4 - core index']
  #allocation1 [shape = 'u32[72,128]{1,0:T(1,128)}', space=vmem, size = 0x9000, scoped, tag = 'internal scratch']
  #allocation2 [shape = 'f32[8,32]{1,0:T(8,128)}', space=vmem, size = 0x1000, scoped, tag = 'scratch operand']
  %s0 = inlined_call_operand.vmem [shape: f32[2,8,32], index: 0, kind: input, shape index: {}]
  %s1 = inlined_call_operand.vmem [shape: bf16[32,96], index: 1, kind: input, shape index: {}]
  %s2 = inlined_call_operand.vmem [shape: f32[1,96], index: 2, kind: input, shape index: {}]
  %s3 = inlined_call_operand.vmem [shape: bf16[32,32], index: 3, kind: input, shape index: {}]
  %s4 = inlined_call_operand.vmem [shape: f32[1,32], index: 4, kind: input, shape index: {}]
  %s5 = inlined_call_operand.vmem [shape: f32[1,32], index: 5, kind: input, shape index: {}]
  %s6 = inlined_call_operand.vmem [shape: f32[1,32], index: 6, kind: input, shape index: {}]
  %s7 = inlined_call_operand.hbm [shape: bf16[32,64], index: 7, kind: input, shape index: {}]
  %s8 = inlined_call_operand.vmem [shape: f32[1,64], index: 8, kind: input, shape index: {}]
  %s9 = inlined_call_operand.vmem [shape: bf16[64,32], index: 9, kind: input, shape index: {}]
  %s10 = inlined_call_operand.vmem [shape: f32[1,32], index: 10, kind: input, shape index: {}]
  %s11 = inlined_call_operand.vmem [shape: f32[1,32], index: 11, kind: input, shape index: {}]
  %s12 = inlined_call_operand.vmem [shape: f32[1,32], index: 12, kind: input, shape index: {}]
  %s13 = inlined_call_operand.hbm [shape: f32[2,8,32], index: 13, kind: output, shape index: {}]
  %s14 = sld [smem:[#allocation0]]
  $region89: #{tpu_custom_call.1} parent=0
    _
  %s16 = ssub.s32 1, %s14
  %s17 = scalar_select 0, %s16, %s14
  $region1: #{tpu_custom_call.1} parent=0
    #allocation3 [shape = 'u8[8192]{0}', space=vmem, size = 0x2000, scoped, tag = 'input window, operand 7, single buffered']
    #allocation4 [shape = 's32[2]{0}', space=sflag, size = 0x8, scoped, tag = 'scoped memory for tpu_custom_call.1']
    #allocation5 [shape = 's32[2]{0}', space=sflag, size = 0x8, scoped, tag = 'scoped memory for tpu_custom_call.1']
    #allocation6 [shape = 'u8[8192]{0}', space=vmem, size = 0x2000, scoped, tag = 'output window, operand 0']
    %18 = vsyncpa [#allocation4], 0
    %19 = vsyncpa [#allocation5], 0
    %s20 = scalar_lea.sflag [#allocation5], 1
    %21 = vsyncpa %s20, 0
    loop: start=0, step=1, limit=4
    $region2: #{tpu_custom_call.1} parent=1 // loop_pre_header
      _
    $region3: #{tpu_custom_call.1} parent=1 // loop_header
      %s23 = sphi 0, %s27
      %p24 = scmp.ge.s32.totalorder %s23, 4
      %s33 = sphi 0, %s35
      %s36 = sphi 0, %s33
      %s37 = sphi 0, %s36
      %s53 = sphi 0, %s37
      %s57 = sphi 0, %s57
      %s59 = sphi 0, %s57
      %s60 = sphi 0, %s59
      %s74 = sphi 0, %s60
      %s78 = sphi 0, %s78
      %s80 = sphi 0, %s78
      %s81 = sphi 0, %s80
      %s95 = sphi 0, %s81
      %s99 = sphi 0, %s99
      %s101 = sphi 0, %s99
      %s102 = sphi 0, %s101
      %s116 = sphi 0, %s102
      %s120 = sphi 0, %s120
      %s122 = sphi 0, %s120
      %s123 = sphi 0, %s122
      %s137 = sphi 0, %s123
      %s141 = sphi 0, %s141
      %s143 = sphi 0, %s141
      %s144 = sphi 0, %s143
      %s158 = sphi 0, %s144
      %s162 = sphi 0, %s162
      %s164 = sphi 0, %s162
      %s165 = sphi 0, %s164
      %s179 = sphi 0, %s165
      %s183 = sphi 0, %s183
      %s185 = sphi 0, %s183
      %s186 = sphi 0, %s185
      %s200 = sphi 0, %s186
      %s204 = sphi 0, %s204
      %s206 = sphi 0, %s204
      %s207 = sphi 0, %s206
      %s221 = sphi 0, %s207
      %s225 = sphi 0, %s225
      %s227 = sphi 0, %s225
      %s228 = sphi 0, %s227
      %s242 = sphi 0, %s228
      %s246 = sphi 0, %s246
      %s248 = sphi 0, %s246
      %s249 = sphi 0, %s248
      %s263 = sphi 0, %s249
      %s267 = sphi 0, %s267
      %s269 = sphi 0, %s267
      %s270 = sphi 0, %s269
      %s284 = sphi 0, %s270
      %s288 = sphi 0, %s288
      %s290 = sphi 0, %s288
      %s291 = sphi 0, %s290
      %s305 = sphi 0, %s291
      %s311 = sphi 0, %s313
      %s314 = sphi 0, %s311
      %s315 = sphi 0, %s314
      %s331 = sphi 0, %s315
    $region4: #{tpu_custom_call.1} parent=1 // loop_header_branch
      %26 = sbr.rel (%p24) target = $region8
    $region5: #{tpu_custom_call.1} parent=1 // loop_body
      %s28 = ssub.s32 %s23, 1
      %s29 = ssub.s32 %s23, 2
      %s30 = sadd.s32 %s23, 1
      %s31 = ssub.s32 %s23, %s30
      %p32 = scmp.eq.s32.totalorder %s31, 0
      %s34 = sadd.s32 %s33, 1
      %s35 = scalar_select %p32, %s33, %s34
      %p38 = pneg %p32
      %p39 = scmp.eq.s32.totalorder %s23, 1
      %p40 = por %p38, %p39
      %p41 = scmp.ne.s32.totalorder %s33, %s36
      %p42 = scmp.eq.s32.totalorder %s23, 0
      %p43 = por %p41, %p42
      %p44 = scmp.ne.s32.totalorder %s33, %s36
      %p45 = scmp.eq.s32.totalorder %s28, 1
      %p46 = por %p44, %p45
      %p47 = scmp.ne.s32.totalorder %s36, %s37
      %p48 = scmp.eq.s32.totalorder %s28, 0
      %p49 = por %p47, %p48
      %p50 = scmp.ne.s32.totalorder %s36, %s37
      %p51 = scmp.eq.s32.totalorder %s29, 1
      %p52 = por %p50, %p51
      %p54 = scmp.ne.s32.totalorder %s37, %s53
      %p55 = scmp.eq.s32.totalorder %s29, 0
      %p56 = por %p54, %p55
      %s58 = sadd.s32 %s57, 1
      %p61 = scmp.eq.s32.totalorder %s23, 1
      %p62 = scmp.ne.s32.totalorder %s57, %s59
      %p63 = scmp.eq.s32.totalorder %s23, 0
      %p64 = por %p62, %p63
      %p65 = scmp.ne.s32.totalorder %s57, %s59
      %p66 = scmp.eq.s32.totalorder %s28, 1
      %p67 = por %p65, %p66
      %p68 = scmp.ne.s32.totalorder %s59, %s60
      %p69 = scmp.eq.s32.totalorder %s28, 0
      %p70 = por %p68, %p69
      %p71 = scmp.ne.s32.totalorder %s59, %s60
      %p72 = scmp.eq.s32.totalorder %s29, 1
      %p73 = por %p71, %p72
      %p75 = scmp.ne.s32.totalorder %s60, %s74
      %p76 = scmp.eq.s32.totalorder %s29, 0
      %p77 = por %p75, %p76
      %s79 = sadd.s32 %s78, 1
      %p82 = scmp.eq.s32.totalorder %s23, 1
      %p83 = scmp.ne.s32.totalorder %s78, %s80
      %p84 = scmp.eq.s32.totalorder %s23, 0
      %p85 = por %p83, %p84
      %p86 = scmp.ne.s32.totalorder %s78, %s80
      %p87 = scmp.eq.s32.totalorder %s28, 1
      %p88 = por %p86, %p87
      %p89 = scmp.ne.s32.totalorder %s80, %s81
      %p90 = scmp.eq.s32.totalorder %s28, 0
      %p91 = por %p89, %p90
      %p92 = scmp.ne.s32.totalorder %s80, %s81
      %p93 = scmp.eq.s32.totalorder %s29, 1
      %p94 = por %p92, %p93
      %p96 = scmp.ne.s32.totalorder %s81, %s95
      %p97 = scmp.eq.s32.totalorder %s29, 0
      %p98 = por %p96, %p97
      %s100 = sadd.s32 %s99, 1
      %p103 = scmp.eq.s32.totalorder %s23, 1
      %p104 = scmp.ne.s32.totalorder %s99, %s101
      %p105 = scmp.eq.s32.totalorder %s23, 0
      %p106 = por %p104, %p105
      %p107 = scmp.ne.s32.totalorder %s99, %s101
      %p108 = scmp.eq.s32.totalorder %s28, 1
      %p109 = por %p107, %p108
      %p110 = scmp.ne.s32.totalorder %s101, %s102
      %p111 = scmp.eq.s32.totalorder %s28, 0
      %p112 = por %p110, %p111
      %p113 = scmp.ne.s32.totalorder %s101, %s102
      %p114 = scmp.eq.s32.totalorder %s29, 1
      %p115 = por %p113, %p114
      %p117 = scmp.ne.s32.totalorder %s102, %s116
      %p118 = scmp.eq.s32.totalorder %s29, 0
      %p119 = por %p117, %p118
      %s121 = sadd.s32 %s120, 1
      %p124 = scmp.eq.s32.totalorder %s23, 1
      %p125 = scmp.ne.s32.totalorder %s120, %s122
      %p126 = scmp.eq.s32.totalorder %s23, 0
      %p127 = por %p125, %p126
      %p128 = scmp.ne.s32.totalorder %s120, %s122
      %p129 = scmp.eq.s32.totalorder %s28, 1
      %p130 = por %p128, %p129
      %p131 = scmp.ne.s32.totalorder %s122, %s123
      %p132 = scmp.eq.s32.totalorder %s28, 0
      %p133 = por %p131, %p132
      %p134 = scmp.ne.s32.totalorder %s122, %s123
      %p135 = scmp.eq.s32.totalorder %s29, 1
      %p136 = por %p134, %p135
      %p138 = scmp.ne.s32.totalorder %s123, %s137
      %p139 = scmp.eq.s32.totalorder %s29, 0
      %p140 = por %p138, %p139
      %s142 = sadd.s32 %s141, 1
      %p145 = scmp.eq.s32.totalorder %s23, 1
      %p146 = scmp.ne.s32.totalorder %s141, %s143
      %p147 = scmp.eq.s32.totalorder %s23, 0
      %p148 = por %p146, %p147
      %p149 = scmp.ne.s32.totalorder %s141, %s143
      %p150 = scmp.eq.s32.totalorder %s28, 1
      %p151 = por %p149, %p150
      %p152 = scmp.ne.s32.totalorder %s143, %s144
      %p153 = scmp.eq.s32.totalorder %s28, 0
      %p154 = por %p152, %p153
      %p155 = scmp.ne.s32.totalorder %s143, %s144
      %p156 = scmp.eq.s32.totalorder %s29, 1
      %p157 = por %p155, %p156
      %p159 = scmp.ne.s32.totalorder %s144, %s158
      %p160 = scmp.eq.s32.totalorder %s29, 0
      %p161 = por %p159, %p160
      %s163 = sadd.s32 %s162, 1
      %p166 = scmp.eq.s32.totalorder %s23, 1
      %p167 = scmp.ne.s32.totalorder %s162, %s164
      %p168 = scmp.eq.s32.totalorder %s23, 0
      %p169 = por %p167, %p168
      %p170 = scmp.ne.s32.totalorder %s162, %s164
      %p171 = scmp.eq.s32.totalorder %s28, 1
      %p172 = por %p170, %p171
      %p173 = scmp.ne.s32.totalorder %s164, %s165
      %p174 = scmp.eq.s32.totalorder %s28, 0
      %p175 = por %p173, %p174
      %p176 = scmp.ne.s32.totalorder %s164, %s165
      %p177 = scmp.eq.s32.totalorder %s29, 1
      %p178 = por %p176, %p177
      %p180 = scmp.ne.s32.totalorder %s165, %s179
      %p181 = scmp.eq.s32.totalorder %s29, 0
      %p182 = por %p180, %p181
      %s184 = sadd.s32 %s183, 1
      %p187 = scmp.eq.s32.totalorder %s23, 1
      %p188 = scmp.ne.s32.totalorder %s183, %s185
      %p189 = scmp.eq.s32.totalorder %s23, 0
      %p190 = por %p188, %p189
      %p191 = scmp.ne.s32.totalorder %s183, %s185
      %p192 = scmp.eq.s32.totalorder %s28, 1
      %p193 = por %p191, %p192
      %p194 = scmp.ne.s32.totalorder %s185, %s186
      %p195 = scmp.eq.s32.totalorder %s28, 0
      %p196 = por %p194, %p195
      %p197 = scmp.ne.s32.totalorder %s185, %s186
      %p198 = scmp.eq.s32.totalorder %s29, 1
      %p199 = por %p197, %p198
      %p201 = scmp.ne.s32.totalorder %s186, %s200
      %p202 = scmp.eq.s32.totalorder %s29, 0
      %p203 = por %p201, %p202
      %s205 = sadd.s32 %s204, 1
      %p208 = scmp.eq.s32.totalorder %s23, 1
      %p209 = scmp.ne.s32.totalorder %s204, %s206
      %p210 = scmp.eq.s32.totalorder %s23, 0
      %p211 = por %p209, %p210
      %p212 = scmp.ne.s32.totalorder %s204, %s206
      %p213 = scmp.eq.s32.totalorder %s28, 1
      %p214 = por %p212, %p213
      %p215 = scmp.ne.s32.totalorder %s206, %s207
      %p216 = scmp.eq.s32.totalorder %s28, 0
      %p217 = por %p215, %p216
      %p218 = scmp.ne.s32.totalorder %s206, %s207
      %p219 = scmp.eq.s32.totalorder %s29, 1
      %p220 = por %p218, %p219
      %p222 = scmp.ne.s32.totalorder %s207, %s221
      %p223 = scmp.eq.s32.totalorder %s29, 0
      %p224 = por %p222, %p223
      %s226 = sadd.s32 %s225, 1
      %p229 = scmp.eq.s32.totalorder %s23, 1
      %p230 = scmp.ne.s32.totalorder %s225, %s227
      %p231 = scmp.eq.s32.totalorder %s23, 0
      %p232 = por %p230, %p231
      %p233 = scmp.ne.s32.totalorder %s225, %s227
      %p234 = scmp.eq.s32.totalorder %s28, 1
      %p235 = por %p233, %p234
      %p236 = scmp.ne.s32.totalorder %s227, %s228
      %p237 = scmp.eq.s32.totalorder %s28, 0
      %p238 = por %p236, %p237
      %p239 = scmp.ne.s32.totalorder %s227, %s228
      %p240 = scmp.eq.s32.totalorder %s29, 1
      %p241 = por %p239, %p240
      %p243 = scmp.ne.s32.totalorder %s228, %s242
      %p244 = scmp.eq.s32.totalorder %s29, 0
      %p245 = por %p243, %p244
      %s247 = sadd.s32 %s246, 1
      %p250 = scmp.eq.s32.totalorder %s23, 1
      %p251 = scmp.ne.s32.totalorder %s246, %s248
      %p252 = scmp.eq.s32.totalorder %s23, 0
      %p253 = por %p251, %p252
      %p254 = scmp.ne.s32.totalorder %s246, %s248
      %p255 = scmp.eq.s32.totalorder %s28, 1
      %p256 = por %p254, %p255
      %p257 = scmp.ne.s32.totalorder %s248, %s249
      %p258 = scmp.eq.s32.totalorder %s28, 0
      %p259 = por %p257, %p258
      %p260 = scmp.ne.s32.totalorder %s248, %s249
      %p261 = scmp.eq.s32.totalorder %s29, 1
      %p262 = por %p260, %p261
      %p264 = scmp.ne.s32.totalorder %s249, %s263
      %p265 = scmp.eq.s32.totalorder %s29, 0
      %p266 = por %p264, %p265
      %s268 = sadd.s32 %s267, 1
      %p271 = scmp.eq.s32.totalorder %s23, 1
      %p272 = scmp.ne.s32.totalorder %s267, %s269
      %p273 = scmp.eq.s32.totalorder %s23, 0
      %p274 = por %p272, %p273
      %p275 = scmp.ne.s32.totalorder %s267, %s269
      %p276 = scmp.eq.s32.totalorder %s28, 1
      %p277 = por %p275, %p276
      %p278 = scmp.ne.s32.totalorder %s269, %s270
      %p279 = scmp.eq.s32.totalorder %s28, 0
      %p280 = por %p278, %p279
      %p281 = scmp.ne.s32.totalorder %s269, %s270
      %p282 = scmp.eq.s32.totalorder %s29, 1
      %p283 = por %p281, %p282
      %p285 = scmp.ne.s32.totalorder %s270, %s284
      %p286 = scmp.eq.s32.totalorder %s29, 0
      %p287 = por %p285, %p286
      %s289 = sadd.s32 %s288, 1
      %p292 = scmp.eq.s32.totalorder %s23, 1
      %p293 = scmp.ne.s32.totalorder %s288, %s290
      %p294 = scmp.eq.s32.totalorder %s23, 0
      %p295 = por %p293, %p294
      %p296 = scmp.ne.s32.totalorder %s288, %s290
      %p297 = scmp.eq.s32.totalorder %s28, 1
      %p298 = por %p296, %p297
      %p299 = scmp.ne.s32.totalorder %s290, %s291
      %p300 = scmp.eq.s32.totalorder %s28, 0
      %p301 = por %p299, %p300
      %p302 = scmp.ne.s32.totalorder %s290, %s291
      %p303 = scmp.eq.s32.totalorder %s29, 1
      %p304 = por %p302, %p303
      %p306 = scmp.ne.s32.totalorder %s291, %s305
      %p307 = scmp.eq.s32.totalorder %s29, 0
      %p308 = por %p306, %p307
      %s309 = ssub.s32 %s23, %s30
      %p310 = scmp.eq.s32.totalorder %s309, 0
      %s312 = sadd.s32 %s311, 1
      %s313 = scalar_select %p310, %s311, %s312
      %p316 = pneg %p310
      %p317 = scmp.eq.s32.totalorder %s23, 1
      %p318 = por %p316, %p317
      %p319 = scmp.ne.s32.totalorder %s311, %s314
      %p320 = scmp.eq.s32.totalorder %s23, 0
      %p321 = por %p319, %p320
      %p322 = scmp.ne.s32.totalorder %s311, %s314
      %p323 = scmp.eq.s32.totalorder %s28, 1
      %p324 = por %p322, %p323
      %p325 = scmp.ne.s32.totalorder %s314, %s315
      %p326 = scmp.eq.s32.totalorder %s28, 0
      %p327 = por %p325, %p326
      %p328 = scmp.ne.s32.totalorder %s314, %s315
      %p329 = scmp.eq.s32.totalorder %s29, 1
      %p330 = por %p328, %p329
      %p332 = scmp.ne.s32.totalorder %s315, %s331
      %p333 = scmp.eq.s32.totalorder %s29, 0
      %p334 = por %p332, %p333
      %p335 = scmp.le.s32.totalorder 1, %s23
      %p336 = scmp.lt.s32.totalorder %s23, 3
      %p337 = pnand %p335, %p336
      %p338 = pneg %p337
      // Predicated region
      $region9: #{tpu_custom_call.1} parent=5 // pred_check
        _
      $region10: #{tpu_custom_call.1} parent=5 // pred_check_branch
        %340 = sbr.rel (%p337) target = $region12
      $region11: #{tpu_custom_call.1} parent=5 // pred_region
        %s341 = ssub.s32 %s23, 1
        // Predicated region
        $region13: #{tpu_custom_call.1} parent=11 // pred_check
          %p342 = pneg %p70
        $region14: #{tpu_custom_call.1} parent=11 // pred_check_branch
          %344 = sbr.rel (%p342) target = $region16
        $region15: #{tpu_custom_call.1} parent=11 // pred_region
          _
        $region16: #{tpu_custom_call.1} parent=11 // pred_fallthru
          _
        // Predicated region
        $region17: #{tpu_custom_call.1} parent=11 // pred_check
          %p345 = pneg %p91
        $region18: #{tpu_custom_call.1} parent=11 // pred_check_branch
          %347 = sbr.rel (%p345) target = $region20
        $region19: #{tpu_custom_call.1} parent=11 // pred_region
          _
        $region20: #{tpu_custom_call.1} parent=11 // pred_fallthru
          _
        // Predicated region
        $region21: #{tpu_custom_call.1} parent=11 // pred_check
          %p348 = pneg %p112
        $region22: #{tpu_custom_call.1} parent=11 // pred_check_branch
          %350 = sbr.rel (%p348) target = $region24
        $region23: #{tpu_custom_call.1} parent=11 // pred_region
          _
        $region24: #{tpu_custom_call.1} parent=11 // pred_fallthru
          _
        // Predicated region
        $region25: #{tpu_custom_call.1} parent=11 // pred_check
          %p351 = pneg %p133
        $region26: #{tpu_custom_call.1} parent=11 // pred_check_branch
          %353 = sbr.rel (%p351) target = $region28
        $region27: #{tpu_custom_call.1} parent=11 // pred_region
          _
        $region28: #{tpu_custom_call.1} parent=11 // pred_fallthru
          _
        // Predicated region
        $region29: #{tpu_custom_call.1} parent=11 // pred_check
          %p354 = pneg %p154
        $region30: #{tpu_custom_call.1} parent=11 // pred_check_branch
          %356 = sbr.rel (%p354) target = $region32
        $region31: #{tpu_custom_call.1} parent=11 // pred_region
          _
        $region32: #{tpu_custom_call.1} parent=11 // pred_fallthru
          _
        // Predicated region
        $region33: #{tpu_custom_call.1} parent=11 // pred_check
          %p357 = pneg %p175
        $region34: #{tpu_custom_call.1} parent=11 // pred_check_branch
          %359 = sbr.rel (%p357) target = $region36
        $region35: #{tpu_custom_call.1} parent=11 // pred_region
          _
        $region36: #{tpu_custom_call.1} parent=11 // pred_fallthru
          _
        // Predicated region
        $region37: #{tpu_custom_call.1} parent=11 // pred_check
          %p360 = pneg %p196
        $region38: #{tpu_custom_call.1} parent=11 // pred_check_branch
          %362 = sbr.rel (%p360) target = $region40
        $region39: #{tpu_custom_call.1} parent=11 // pred_region
          %364 = vsyncadd [#allocation4], 0
          %s365 = sshll.u32 %s7, 4
          %s366 = int_to_ptr.hbm [resolvable:$true] %s365
          %s367 = sshll.u32 [#allocation3], 4
          %s368 = int_to_ptr.vmem [resolvable:$true] %s367
          %373 = dma.hbm_to_vmem [thread:$0]  %s366, 256, %s368, [#allocation4], 64, 64, 4
        $region40: #{tpu_custom_call.1} parent=11 // pred_fallthru
          _
        // Predicated region
        $region41: #{tpu_custom_call.1} parent=11 // pred_check
          %p374 = pneg %p217
        $region42: #{tpu_custom_call.1} parent=11 // pred_check_branch
          %376 = sbr.rel (%p374) target = $region44
        $region43: #{tpu_custom_call.1} parent=11 // pred_region
          _
        $region44: #{tpu_custom_call.1} parent=11 // pred_fallthru
          _
        // Predicated region
        $region45: #{tpu_custom_call.1} parent=11 // pred_check
          %p377 = pneg %p238
        $region46: #{tpu_custom_call.1} parent=11 // pred_check_branch
          %379 = sbr.rel (%p377) target = $region48
        $region47: #{tpu_custom_call.1} parent=11 // pred_region
          _
        $region48: #{tpu_custom_call.1} parent=11 // pred_fallthru
          _
        // Predicated region
        $region49: #{tpu_custom_call.1} parent=11 // pred_check
          %p380 = pneg %p259
        $region50: #{tpu_custom_call.1} parent=11 // pred_check_branch
          %382 = sbr.rel (%p380) target = $region52
        $region51: #{tpu_custom_call.1} parent=11 // pred_region
          _
        $region52: #{tpu_custom_call.1} parent=11 // pred_fallthru
          _
        // Predicated region
        $region53: #{tpu_custom_call.1} parent=11 // pred_check
          %p383 = pneg %p280
        $region54: #{tpu_custom_call.1} parent=11 // pred_check_branch
          %385 = sbr.rel (%p383) target = $region56
        $region55: #{tpu_custom_call.1} parent=11 // pred_region
          _
        $region56: #{tpu_custom_call.1} parent=11 // pred_fallthru
          _
        // Predicated region
        $region57: #{tpu_custom_call.1} parent=11 // pred_check
          %p386 = pneg %p301
        $region58: #{tpu_custom_call.1} parent=11 // pred_check_branch
          %388 = sbr.rel (%p386) target = $region60
        $region59: #{tpu_custom_call.1} parent=11 // pred_region
          _
        $region60: #{tpu_custom_call.1} parent=11 // pred_fallthru
          _
      $region12: #{tpu_custom_call.1} parent=5 // pred_fallthru
        _
      %p389 = scmp.lt.s32.totalorder %s23, 2
      // Predicated region
      $region61: #{tpu_custom_call.1} parent=5 // pred_check
        %p390 = pneg %p389
      $region62: #{tpu_custom_call.1} parent=5 // pred_check_branch
        %392 = sbr.rel (%p390) target = $region64
      $region63: #{tpu_custom_call.1} parent=5 // pred_region
        // Predicated region
        $region65: #{tpu_custom_call.1} parent=63 // pred_check
          %p393 = pneg %p43
        $region66: #{tpu_custom_call.1} parent=63 // pred_check_branch
          %395 = sbr.rel (%p393) target = $region68
        $region67: #{tpu_custom_call.1} parent=63 // pred_region
          %p396 = scmp.lt.s32.totalorder %s23, 1
          %s397 = scalar_select %p396, %s23, 1
          %s398 = smul.addr %s397, 8
          %s399 = scalar_lea.vmem %s0, %s398
        $region68: #{tpu_custom_call.1} parent=63 // pred_fallthru
          _
      $region64: #{tpu_custom_call.1} parent=5 // pred_fallthru
        _
      %p400 = scmp.le.s32.totalorder 1, %s23
      %p401 = scmp.lt.s32.totalorder %s23, 3
      %p402 = pnand %p400, %p401
      %p403 = pneg %p402
      // Predicated region
      $region69: #{tpu_custom_call.1} parent=5 // pred_check
        _
      $region70: #{tpu_custom_call.1} parent=5 // pred_check_branch
        %405 = sbr.rel (%p402) target = $region72
      $region71: #{tpu_custom_call.1} parent=5 // pred_region
        %s406 = ssub.s32 %s23, 1
        // Predicated region
        $region73: #{tpu_custom_call.1} parent=71 // pred_check
          %p407 = pneg %p196
        $region74: #{tpu_custom_call.1} parent=71 // pred_check_branch
          %409 = sbr.rel (%p407) target = $region76
        $region75: #{tpu_custom_call.1} parent=71 // pred_region
          %411 = dma.done [#allocation4], 256
        $region76: #{tpu_custom_call.1} parent=71 // pred_fallthru
          _
        %p412 = scmp.lt.s32.totalorder %s28, 1
        %s413 = scalar_select %p412, %s28, 1
        %s414 = smul.addr %s413, 8
        %s415 = scalar_lea.vmem %s0, %s414
        %p416 = pneg %p49
        %p417 = pneg %p46
        %p418 = pneg %p70
        %p419 = pneg %p67
        %p420 = pneg %p91
        %p421 = pneg %p88
        %p422 = pneg %p112
        %p423 = pneg %p109
        %p424 = pneg %p133
        %p425 = pneg %p130
        %p426 = pneg %p154
        %p427 = pneg %p151
        %p428 = pneg %p175
        %p429 = pneg %p172
        %p430 = pneg %p196
        %p431 = pneg %p193
        %p432 = pneg %p217
        %p433 = pneg %p214
        %p434 = pneg %p238
        %p435 = pneg %p235
        %p436 = pneg %p259
        %p437 = pneg %p256
        %p438 = pneg %p280
        %p439 = pneg %p277
        %p440 = pneg %p301
        %p441 = pneg %p298
        %p442 = pneg %p327
        %p443 = pneg %p324
        %s444 = sand.u32 %s314, 1
        %s445 = scalar_lea.sflag [#allocation5], %s444
        %s446 = sand.u32 %s314, 1
        %s447 = smul.addr %s446, 8
        %s448 = scalar_lea.vmem [#allocation6], %s447
        %p449 = scmp.lt.s32.totalorder %s28, 1
        %s450 = scalar_select %p449, %s28, 1
        %s451 = smul.addr %s450, 8
        %s452 = scalar_lea.vmem %s0, %s451
        %v454 = vld [vmem:[%s452] sm:$0xff]
        %v455 = vpack.c.bf16 %v454, %v454
        %v456 = vld [vmem:[%s1] sm:$0xf]
        %v457 = vld [vmem:[%s1 + $0x4] sm:$0xf]
        %v458 = vld [vmem:[%s1 + $0x8] sm:$0xf]
        %v459 = vld [vmem:[%s1 + $0xc] sm:$0xf]
        %v460 = vld [vmem:[%s2] sm:$0x1]
        %v462 = vperm.slane %v460, 0
        %v468 = vunpack.c.l.b16 %v456
        %v469 = vunpack.c.l.b16 %v457
        %v470 = vunpack.c.l.b16 %v458
        %v471 = vunpack.c.l.b16 %v459
        %v472 = vpack.c.b16 %v469, %v468
        %v473 = vpack.c.b16 %v471, %v470
        %vm476 = vcmask 261120
        %v478 = vsel %vm476, %v455, 0
        %480 = vmatpush.bf16.msra.mxu0 0
        %481 = vmatpush.bf16.msra.mxu0 0
        %482 = vmatpush.bf16.msra.mxu0 0
        %483 = vmatpush.bf16.msra.mxu0 0
        %484 = vmatpush.bf16.msra.mxu0 0
        %485 = vmatpush.bf16.msra.mxu0 0
        %486 = vmatpush.bf16.msra.mxu0 %v473
        %487 = vmatpush.bf16.msra.mxu0 %v472
        %488 = vmatmul.bf16.gmra.mxu0 %v478
        %v489 = vpop.f32.mrf.mxu0
        %v490 = vadd.f32 %v462, %v489
        %v491 = vpop.f32.mrf.mxu0
        %492 = vdwg.mxu0
        %v493 = vmul.f32 %v490, 0.35355338
        %v494 = vpack.c.bf16 %v493, %v493
        %v495 = vpack.c.bf16 %v490, %v490
        %v497 = vunpack.c.l.b16 %v495
        %v498 = vpack.c.b16 %v497, %v497
        %499 = vrot.lane.b32.xlu0 %v498, 96
        %v500 = vpop.permute.xlu0 %499
        %vm501 = vcmask 64512
        %v503 = vsel %vm501, %v494, 0
        %v506 = vsel %vm501, %v500, 0
        %508 = vmatpush.bf16.xpose.msra.mxu0 0
        %509 = vmatpush.bf16.xpose.msra.mxu0 0
        %510 = vmatpush.bf16.xpose.msra.mxu0 0
        %511 = vmatpush.bf16.xpose.msra.mxu0 0
        %512 = vmatpush.bf16.xpose.msra.mxu0 0
        %513 = vmatpush.bf16.xpose.msra.mxu0 0
        %514 = vmatpush.bf16.xpose.msra.mxu0 0
        %515 = vmatpush.bf16.xpose.msra.mxu0 %v506
        %516 = vmatmul.bf16.gmra.mxu0 %v503
        %v517 = vpop.f32.mrf.mxu0
        %v518 = vadd.f32 0.0, %v517
        %v519 = vpop.f32.mrf.mxu0
        %520 = vdwg.mxu0
        %v521 = vsel %vm501, %v518, -inf
        %522 = vmax.xlane.f32.xlu0 %v521
        %v523 = vpop.xlane.xlu0 %522
        %v524 = vsub.f32 %v518, %v523
        %v525 = vmul.f32 %v524, 1.442695
        %v526 = vpow.pop %v525
        %v527 = vsel %vm501, %v526, 0.0
        %528 = vadd.xlane.f32.xlu0 %v527
        %v529 = vpop.xlane.xlu0 %528
        %v530 = vpack.c.bf16 %v526, %v526
        %531 = vrot.lane.b32.xlu0 %v498, 64
        %v532 = vpop.permute.xlu0 %531
        %v534 = vsel %vm501, %v530, 0
        %vm536 = vcmask 1043456
        %v538 = vsel %vm536, %v532, 0
        %540 = vmatpush.bf16.msra.mxu0 0
        %541 = vmatpush.bf16.msra.mxu0 0
        %542 = vmatpush.bf16.msra.mxu0 0
        %543 = vmatpush.bf16.msra.mxu0 0
        %544 = vmatpush.bf16.msra.mxu0 0
        %545 = vmatpush.bf16.msra.mxu0 0
        %546 = vmatpush.bf16.msra.mxu0 0
        %547 = vmatpush.bf16.msra.mxu0 %v538
        %548 = vmatmul.bf16.gmra.mxu0 %v534
        %v549 = vpop.f32.mrf.mxu0
        %v550 = vadd.f32 0.0, %v549
        %v551 = vpop.f32.mrf.mxu0
        %552 = vdwg.mxu0
        %v553 = vrcp.pop %v529
        %v554 = vmul.f32 %v550, %v553
        %555 = vst.msk [vmem:[#allocation2] sm:$0xff] %vm501, %v554
        %v557 = vunpack.c.l.b16 %v494
        %v558 = vpack.c.b16 %v557, %v557
        %559 = vrot.lane.b32.xlu0 %v558, 120
        %v560 = vpop.permute.xlu0 %559
        %561 = vrot.lane.b32.xlu0 %v498, 88
        %v562 = vpop.permute.xlu0 %561
        %v564 = vsel %vm501, %v560, 0
        %v567 = vsel %vm501, %v562, 0
        %569 = vmatpush.bf16.xpose.msra.mxu0 0
        %570 = vmatpush.bf16.xpose.msra.mxu0 0
        %571 = vmatpush.bf16.xpose.msra.mxu0 0
        %572 = vmatpush.bf16.xpose.msra.mxu0 0
        %573 = vmatpush.bf16.xpose.msra.mxu0 0
        %574 = vmatpush.bf16.xpose.msra.mxu0 0
        %575 = vmatpush.bf16.xpose.msra.mxu0 0
        %576 = vmatpush.bf16.xpose.msra.mxu0 %v567
        %577 = vmatmul.bf16.gmra.mxu0 %v564
        %v578 = vpop.f32.mrf.mxu0
        %v579 = vadd.f32 0.0, %v578
        %v580 = vpop.f32.mrf.mxu0
        %581 = vdwg.mxu0
        %v582 = vsel %vm501, %v579, -inf
        %583 = vmax.xlane.f32.xlu0 %v582
        %v584 = vpop.xlane.xlu0 %583
        %v585 = vsub.f32 %v579, %v584
        %v586 = vmul.f32 %v585, 1.442695
        %v587 = vpow.pop %v586
        %v588 = vsel %vm501, %v587, 0.0
        %589 = vadd.xlane.f32.xlu0 %v588
        %v590 = vpop.xlane.xlu0 %589
        %v591 = vpack.c.bf16 %v587, %v587
        %592 = vrot.lane.b32.xlu0 %v498, 56
        %v593 = vpop.permute.xlu0 %592
        %v595 = vsel %vm501, %v591, 0
        %v598 = vsel %vm536, %v593, 0
        %600 = vmatpush.bf16.msra.mxu0 0
        %601 = vmatpush.bf16.msra.mxu0 0
        %602 = vmatpush.bf16.msra.mxu0 0
        %603 = vmatpush.bf16.msra.mxu0 0
        %604 = vmatpush.bf16.msra.mxu0 0
        %605 = vmatpush.bf16.msra.mxu0 0
        %606 = vmatpush.bf16.msra.mxu0 0
        %607 = vmatpush.bf16.msra.mxu0 %v598
        %608 = vmatmul.bf16.gmra.mxu0 %v595
        %v609 = vpop.f32.mrf.mxu0
        %v610 = vadd.f32 0.0, %v609
        %v611 = vpop.f32.mrf.mxu0
        %612 = vdwg.mxu0
        %v613 = vrcp.pop %v590
        %v614 = vmul.f32 %v610, %v613
        %616 = vrot.lane.b32.xlu0 %v614, 8
        %v617 = vpop.permute.xlu0 %616
        %vm619 = vcmask 130112
        %620 = vst.msk [vmem:[#allocation2] sm:$0xff] %vm619, %v617
        %621 = vrot.lane.b32.xlu0 %v558, 112
        %v622 = vpop.permute.xlu0 %621
        %623 = vrot.lane.b32.xlu0 %v498, 80
        %v624 = vpop.permute.xlu0 %623
        %v626 = vsel %vm501, %v622, 0
        %v629 = vsel %vm501, %v624, 0
        %631 = vmatpush.bf16.xpose.msra.mxu0 0
        %632 = vmatpush.bf16.xpose.msra.mxu0 0
        %633 = vmatpush.bf16.xpose.msra.mxu0 0
        %634 = vmatpush.bf16.xpose.msra.mxu0 0
        %635 = vmatpush.bf16.xpose.msra.mxu0 0
        %636 = vmatpush.bf16.xpose.msra.mxu0 0
        %637 = vmatpush.bf16.xpose.msra.mxu0 0
        %638 = vmatpush.bf16.xpose.msra.mxu0 %v629
        %639 = vmatmul.bf16.gmra.mxu0 %v626
        %v640 = vpop.f32.mrf.mxu0
        %v641 = vadd.f32 0.0, %v640
        %v642 = vpop.f32.mrf.mxu0
        %643 = vdwg.mxu0
        %v644 = vsel %vm501, %v641, -inf
        %645 = vmax.xlane.f32.xlu0 %v644
        %v646 = vpop.xlane.xlu0 %645
        %v647 = vsub.f32 %v641, %v646
        %v648 = vmul.f32 %v647, 1.442695
        %v649 = vpow.pop %v648
        %v650 = vsel %vm501, %v649, 0.0
        %651 = vadd.xlane.f32.xlu0 %v650
        %v652 = vpop.xlane.xlu0 %651
        %v653 = vpack.c.bf16 %v649, %v649
        %654 = vrot.lane.b32.xlu0 %v498, 48
        %v655 = vpop.permute.xlu0 %654
        %v657 = vsel %vm501, %v653, 0
        %v660 = vsel %vm536, %v655, 0
        %662 = vmatpush.bf16.msra.mxu0 0
        %663 = vmatpush.bf16.msra.mxu0 0
        %664 = vmatpush.bf16.msra.mxu0 0
        %665 = vmatpush.bf16.msra.mxu0 0
        %666 = vmatpush.bf16.msra.mxu0 0
        %667 = vmatpush.bf16.msra.mxu0 0
        %668 = vmatpush.bf16.msra.mxu0 0
        %669 = vmatpush.bf16.msra.mxu0 %v660
        %670 = vmatmul.bf16.gmra.mxu0 %v657
        %v671 = vpop.f32.mrf.mxu0
        %v672 = vadd.f32 0.0, %v671
        %v673 = vpop.f32.mrf.mxu0
        %674 = vdwg.mxu0
        %v675 = vrcp.pop %v652
        %v676 = vmul.f32 %v672, %v675
        %678 = vrot.lane.b32.xlu0 %v676, 16
        %v679 = vpop.permute.xlu0 %678
        %vm681 = vcmask 195712
        %682 = vst.msk [vmem:[#allocation2] sm:$0xff] %vm681, %v679
        %683 = vrot.lane.b32.xlu0 %v558, 104
        %v684 = vpop.permute.xlu0 %683
        %685 = vrot.lane.b32.xlu0 %v498, 72
        %v686 = vpop.permute.xlu0 %685
        %v688 = vsel %vm501, %v684, 0
        %v691 = vsel %vm501, %v686, 0
        %693 = vmatpush.bf16.xpose.msra.mxu0 0
        %694 = vmatpush.bf16.xpose.msra.mxu0 0
        %695 = vmatpush.bf16.xpose.msra.mxu0 0
        %696 = vmatpush.bf16.xpose.msra.mxu0 0
        %697 = vmatpush.bf16.xpose.msra.mxu0 0
        %698 = vmatpush.bf16.xpose.msra.mxu0 0
        %699 = vmatpush.bf16.xpose.msra.mxu0 0
        %700 = vmatpush.bf16.xpose.msra.mxu0 %v691
        %701 = vmatmul.bf16.gmra.mxu0 %v688
        %v702 = vpop.f32.mrf.mxu0
        %v703 = vadd.f32 0.0, %v702
        %v704 = vpop.f32.mrf.mxu0
        %705 = vdwg.mxu0
        %v706 = vsel %vm501, %v703, -inf
        %707 = vmax.xlane.f32.xlu0 %v706
        %v708 = vpop.xlane.xlu0 %707
        %v709 = vsub.f32 %v703, %v708
        %v710 = vmul.f32 %v709, 1.442695
        %v711 = vpow.pop %v710
        %v712 = vsel %vm501, %v711, 0.0
        %713 = vadd.xlane.f32.xlu0 %v712
        %v714 = vpop.xlane.xlu0 %713
        %v715 = vpack.c.bf16 %v711, %v711
        %716 = vrot.lane.b32.xlu0 %v498, 40
        %v717 = vpop.permute.xlu0 %716
        %v719 = vsel %vm501, %v715, 0
        %v722 = vsel %vm536, %v717, 0
        %724 = vmatpush.bf16.msra.mxu0 0
        %725 = vmatpush.bf16.msra.mxu0 0
        %726 = vmatpush.bf16.msra.mxu0 0
        %727 = vmatpush.bf16.msra.mxu0 0
        %728 = vmatpush.bf16.msra.mxu0 0
        %729 = vmatpush.bf16.msra.mxu0 0
        %730 = vmatpush.bf16.msra.mxu0 0
        %731 = vmatpush.bf16.msra.mxu0 %v722
        %732 = vmatmul.bf16.gmra.mxu0 %v719
        %v733 = vpop.f32.mrf.mxu0
        %v734 = vadd.f32 0.0, %v733
        %v735 = vpop.f32.mrf.mxu0
        %736 = vdwg.mxu0
        %v737 = vrcp.pop %v714
        %v738 = vmul.f32 %v734, %v737
        %740 = vrot.lane.b32.xlu0 %v738, 24
        %v741 = vpop.permute.xlu0 %740
        %vm743 = vcmask 261312
        %744 = vst.msk [vmem:[#allocation2] sm:$0xff] %vm743, %v741
        %v745 = vld [vmem:[#allocation2] sm:$0xff]
        %v746 = vpack.c.bf16 %v745, %v745
        %v747 = vld [vmem:[%s3] sm:$0xf]
        %v748 = vld [vmem:[%s3 + $0x4] sm:$0xf]
        %v749 = vld [vmem:[%s3 + $0x8] sm:$0xf]
        %v750 = vld [vmem:[%s3 + $0xc] sm:$0xf]
        %v751 = vld [vmem:[%s4] sm:$0x1]
        %v753 = vperm.slane %v751, 0
        %v759 = vunpack.c.l.b16 %v747
        %v760 = vunpack.c.l.b16 %v748
        %v761 = vunpack.c.l.b16 %v749
        %v762 = vunpack.c.l.b16 %v750
        %v763 = vpack.c.b16 %v760, %v759
        %v764 = vpack.c.b16 %v762, %v761
        %v768 = vsel %vm476, %v746, 0
        %770 = vmatpush.bf16.msra.mxu0 0
        %771 = vmatpush.bf16.msra.mxu0 0
        %772 = vmatpush.bf16.msra.mxu0 0
        %773 = vmatpush.bf16.msra.mxu0 0
        %774 = vmatpush.bf16.msra.mxu0 0
        %775 = vmatpush.bf16.msra.mxu0 0
        %776 = vmatpush.bf16.msra.mxu0 %v764
        %777 = vmatpush.bf16.msra.mxu0 %v763
        %778 = vmatmul.bf16.gmra.mxu0 %v768
        %v779 = vpop.f32.mrf.mxu0
        %v780 = vadd.f32 %v753, %v779
        %v781 = vpop.f32.mrf.mxu0
        %782 = vdwg.mxu0
        %v783 = vadd.f32 %v780, %v454
        %v784 = vld [vmem:[%s5] sm:$0x1]
        %v785 = vld [vmem:[%s6] sm:$0x1]
        %v786 = vsel %vm476, %v783, 0.0
        %787 = vadd.xlane.f32.xlu0 %v786
        %v788 = vpop.xlane.xlu0 %787
        %v789 = vmul.f32 %v788, 0.03125
        %v790 = vsub.f32 %v783, %v789
        %v791 = vmul.f32 %v790, %v790
        %v792 = vsel %vm476, %v791, 0.0
        %793 = vadd.xlane.f32.xlu0 %v792
        %v794 = vpop.xlane.xlu0 %793
        %v795 = vmul.f32 %v794, 0.03125
        %v796 = vadd.f32 %v795, 1e-05
        %v797 = vrsqrt.pop %v796
        %v798 = vmul.f32 %v797, %v796
        %v799 = vmul.f32 %v798, %v797
        %v800 = vmul.f32 0.5, %v799
        %v801 = vsub.f32 1.5, %v800
        %v802 = vmul.f32 %v797, %v801
        %vm803 = vweird.f32 %v796
        %vm804 = vweird.f32 %v797
        %vm805 = vmor %vm803, %vm804
        %v806 = vsel %vm805, %v797, %v802
        %v807 = vmul.f32 %v790, %v806
        %v809 = vperm.slane %v784, 0
        %v811 = vmul.f32 %v807, %v809
        %v813 = vperm.slane %v785, 0
        %v815 = vadd.f32 %v811, %v813
        %v816 = vpack.c.bf16 %v815, %v815
        %v817 = vld [vmem:[#allocation3] sm:$0xf]
        %v818 = vld [vmem:[#allocation3 + $0x4] sm:$0xf]
        %v819 = vld [vmem:[#allocation3 + $0x8] sm:$0xf]
        %v820 = vld [vmem:[#allocation3 + $0xc] sm:$0xf]
        %v821 = vld [vmem:[%s8] sm:$0x1]
        %v823 = vperm.slane %v821, 0
        %v829 = vunpack.c.l.b16 %v817
        %v830 = vunpack.c.l.b16 %v818
        %v831 = vunpack.c.l.b16 %v819
        %v832 = vunpack.c.l.b16 %v820
        %v833 = vpack.c.b16 %v830, %v829
        %v834 = vpack.c.b16 %v832, %v831
        %v838 = vsel %vm476, %v816, 0
        %840 = vmatpush.bf16.msra.mxu0 0
        %841 = vmatpush.bf16.msra.mxu0 0
        %842 = vmatpush.bf16.msra.mxu0 0
        %843 = vmatpush.bf16.msra.mxu0 0
        %844 = vmatpush.bf16.msra.mxu0 0
        %845 = vmatpush.bf16.msra.mxu0 0
        %846 = vmatpush.bf16.msra.mxu0 %v834
        %847 = vmatpush.bf16.msra.mxu0 %v833
        %848 = vmatmul.bf16.gmra.mxu0 %v838
        %v849 = vpop.f32.mrf.mxu0
        %v850 = vadd.f32 %v823, %v849
        %v851 = vpop.f32.mrf.mxu0
        %852 = vdwg.mxu0
        %v853 = vmax.f32 %v850, 0.0
        %v854 = vpack.c.bf16 %v853, %v853
        %v855 = vld [vmem:[%s9] sm:$0xf]
        %v856 = vld [vmem:[%s9 + $0x4] sm:$0xf]
        %v857 = vld [vmem:[%s9 + $0x8] sm:$0xf]
        %v858 = vld [vmem:[%s9 + $0xc] sm:$0xf]
        %v859 = vld [vmem:[%s9 + $0x10] sm:$0xf]
        %v860 = vld [vmem:[%s9 + $0x14] sm:$0xf]
        %v861 = vld [vmem:[%s9 + $0x18] sm:$0xf]
        %v862 = vld [vmem:[%s9 + $0x1c] sm:$0xf]
        %v863 = vld [vmem:[%s10] sm:$0x1]
        %v865 = vperm.slane %v863, 0
        %v875 = vunpack.c.l.b16 %v855
        %v876 = vunpack.c.l.b16 %v856
        %v877 = vunpack.c.l.b16 %v857
        %v878 = vunpack.c.l.b16 %v858
        %v879 = vunpack.c.l.b16 %v859
        %v880 = vunpack.c.l.b16 %v860
        %v881 = vunpack.c.l.b16 %v861
        %v882 = vunpack.c.l.b16 %v862
        %v883 = vpack.c.b16 %v876, %v875
        %v884 = vpack.c.b16 %v878, %v877
        %v885 = vpack.c.b16 %v880, %v879
        %v886 = vpack.c.b16 %v882, %v881
        %vm891 = vcmask 523264
        %v893 = vsel %vm891, %v854, 0
        %895 = vmatpush.bf16.msra.mxu0 0
        %896 = vmatpush.bf16.msra.mxu0 0
        %897 = vmatpush.bf16.msra.mxu0 0
        %898 = vmatpush.bf16.msra.mxu0 0
        %899 = vmatpush.bf16.msra.mxu0 %v886
        %900 = vmatpush.bf16.msra.mxu0 %v885
        %901 = vmatpush.bf16.msra.mxu0 %v884
        %902 = vmatpush.bf16.msra.mxu0 %v883
        %903 = vmatmul.bf16.gmra.mxu0 %v893
        %v904 = vpop.f32.mrf.mxu0
        %v905 = vadd.f32 %v865, %v904
        %v906 = vpop.f32.mrf.mxu0
        %907 = vdwg.mxu0
        %v908 = vadd.f32 %v905, %v815
        %v909 = vld [vmem:[%s11] sm:$0x1]
        %v910 = vld [vmem:[%s12] sm:$0x1]
        %v911 = vsel %vm476, %v908, 0.0
        %912 = vadd.xlane.f32.xlu0 %v911
        %v913 = vpop.xlane.xlu0 %912
        %v914 = vmul.f32 %v913, 0.03125
        %v915 = vsub.f32 %v908, %v914
        %v916 = vmul.f32 %v915, %v915
        %v917 = vsel %vm476, %v916, 0.0
        %918 = vadd.xlane.f32.xlu0 %v917
        %v919 = vpop.xlane.xlu0 %918
        %v920 = vmul.f32 %v919, 0.03125
        %v921 = vadd.f32 %v920, 1e-05
        %v922 = vrsqrt.pop %v921
        %v923 = vmul.f32 %v922, %v921
        %v924 = vmul.f32 %v923, %v922
        %v925 = vmul.f32 0.5, %v924
        %v926 = vsub.f32 1.5, %v925
        %v927 = vmul.f32 %v922, %v926
        %vm928 = vweird.f32 %v921
        %vm929 = vweird.f32 %v922
        %vm930 = vmor %vm928, %vm929
        %v931 = vsel %vm930, %v922, %v927
        %v932 = vmul.f32 %v915, %v931
        %v934 = vperm.slane %v909, 0
        %v936 = vmul.f32 %v932, %v934
        %v938 = vperm.slane %v910, 0
        %v940 = vadd.f32 %v936, %v938
        %941 = vst.msk [vmem:[%s448] sm:$0xff] %vm476, %v940
        %s942 = sand.u32 %s314, 1
        %s943 = scalar_lea.sflag [#allocation5], %s942
        %s944 = sand.u32 %s314, 1
        %s945 = smul.addr %s944, 8
        %s946 = scalar_lea.vmem [#allocation6], %s945
        // Predicated region
        $region77: #{tpu_custom_call.1} parent=71 // pred_check
          %p947 = pneg %p324
        $region78: #{tpu_custom_call.1} parent=71 // pred_check_branch
          %949 = sbr.rel (%p947) target = $region80
        $region79: #{tpu_custom_call.1} parent=71 // pred_region
          %951 = vsyncadd %s943, 0
          %s952 = smul.addr %s28, 8
          %s953 = scalar_lea.hbm %s13, %s952
          %s955 = sshll.u32 %s946, 4
          %s956 = int_to_ptr.vmem [resolvable:$true] %s955
          %s957 = sshll.u32 %s953, 4
          %s958 = int_to_ptr.hbm [resolvable:$true] %s957
          %960 = dma.vmem_to_hbm [thread:$0]  %s956, 128, %s958, %s943
        $region80: #{tpu_custom_call.1} parent=71 // pred_fallthru
          _
      $region72: #{tpu_custom_call.1} parent=5 // pred_fallthru
        _
      %p961 = scmp.le.s32.totalorder 2, %s23
      // Predicated region
      $region81: #{tpu_custom_call.1} parent=5 // pred_check
        %p962 = pneg %p961
      $region82: #{tpu_custom_call.1} parent=5 // pred_check_branch
        %964 = sbr.rel (%p962) target = $region84
      $region83: #{tpu_custom_call.1} parent=5 // pred_region
        %s965 = ssub.s32 %s23, 2
        // Predicated region
        $region85: #{tpu_custom_call.1} parent=83 // pred_check
          %p966 = pneg %p330
        $region86: #{tpu_custom_call.1} parent=83 // pred_check_branch
          %968 = sbr.rel (%p966) target = $region88
        $region87: #{tpu_custom_call.1} parent=83 // pred_region
          %s969 = sand.u32 %s315, 1
          %s970 = scalar_lea.sflag [#allocation5], %s969
          %s971 = sand.u32 %s315, 1
          %s972 = smul.addr %s971, 8
          %s973 = scalar_lea.vmem [#allocation6], %s972
          %975 = dma.done %s970, 128
        $region88: #{tpu_custom_call.1} parent=83 // pred_fallthru
          _
      $region84: #{tpu_custom_call.1} parent=5 // pred_fallthru
        _
    $region6: #{tpu_custom_call.1} parent=1 // loop_footer
      %s27 = sadd.s32 1, %s23
    $region7: #{tpu_custom_call.1} parent=1 // loop_footer_branch
      %22 = sbr.rel target = $region3
    $region8: #{tpu_custom_call.1} parent=1 // loop_exit
      _
    %976 = vsyncpa [#allocation4], 1
    %s977 = scalar_lea.sflag [#allocation4], 1
    %978 = vsyncpa %s977, 1
    %979 = vsyncpa [#allocation5], 1
    %s980 = scalar_lea.sflag [#allocation5], 1
    %981 = vsyncpa %s980, 1

</llo_original>
